<compile_context>
chip_gen: v5e
topology: v5e:2x2
jax: 0.10.0
libtpu: 0.0.40
codegen_flags: <defaults>
</compile_context>

<pallas_src>
import functools

import jax
import jax.numpy as jnp
from jax.experimental import pallas as pl
from jax.experimental.pallas import tpu as pltpu

EPS = 1e-5


def band_weights_per_tap(w_hwio, W):
    """w_hwio: (3, 3, Ci, Co) -> per-dy banded weights (3, W*Ci, W*Co).

    B[dy, wi*Ci+ci, wo*Co+co] = w[dy, wi-wo+1, ci, co] when 0 <= wi-wo+1 < 3 else 0,
    i.e. the dx taps and the zero padding along W are folded into the weights.
    """
    kh, kw, Ci, Co = w_hwio.shape
    wi = jnp.arange(W)[:, None]
    wo = jnp.arange(W)[None, :]
    tap = wi - wo + 1                                # which dx tap feeds wi -> wo
    mask = (tap >= 0) & (tap < kw)                   # (W, W)
    tap = jnp.clip(tap, 0, kw - 1)
    g = w_hwio[:, tap]                               # (kh, W_in, W_out, Ci, Co)
    g = jnp.where(mask[None, :, :, None, None], g, 0.0)
    g = jnp.transpose(g, (0, 1, 3, 2, 4))            # (kh, W_in, Ci, W_out, Co)
    return g.reshape(kh, W * Ci, W * Co)


def double_conv_kernel(xh_ref, b1_ref, b2_ref, p_ref, pc_ref, o_ref, mid_ref,
                       *, count):
    # xh_ref : (N, H+2, W*Ci)   bf16  input, padded along H only
    # b1_ref : (3, W*Ci, W*Co)  bf16  per-dy banded weights, conv1
    # b2_ref : (3, W*Co, W*Co)  bf16  per-dy banded weights, conv2
    # p_ref  : (W*Co, W*Co)     f32   0/1 channel fold+broadcast matrix (P = F @ F^T)
    # pc_ref : (4, W*Co)        f32   lane-tiled [gamma1, beta1, gamma2, beta2]
    # o_ref  : (N*H, W*Co)      f32   lane-dense output
    # mid_ref: (N, H+2, W*Co)   bf16  VMEM scratch holding the H-padded conv1 activation
    N, Hp, _ = xh_ref.shape
    H = Hp - 2
    R, WCo = o_ref.shape
    inv_cnt = jnp.float32(1.0 / count)               # 1 / (N*H*W)

    P = p_ref[...]
    pc = pc_ref[...]

    def conv3(src_ref, b_ref):
        # src_ref: (N, H+2, K) bf16 ref; b_ref: (3, K, WCo) bf16 ref -> (R, WCo) f32.
        # Three accumulated dots against dy-shifted slices (no patch concatenate).
        K = src_ref.shape[-1]
        acc = None
        for dy in range(3):                          # static unroll
            x_dy = src_ref[:, dy:dy + H, :].reshape(R, K)
            d = jnp.dot(x_dy, b_ref[dy], preferred_element_type=jnp.float32)
            acc = d if acc is None else acc + d
        return acc

    def bn_relu(y, gamma_l, beta_l):
        # One-pass batch stats (biased variance), PyTorch training-mode BN + ReLU.
        # Lane-wise sums fold straight to lane-broadcast channel stats via P.
        # (axis-0 sums are fine at R=32; switch to an MXU ones-row dot for big slabs.)
        s_wc = jnp.sum(y, axis=0, keepdims=True)     # (1, WCo)
        ss_wc = jnp.sum(y * y, axis=0, keepdims=True)
        mean_l = jnp.dot(s_wc, P, preferred_element_type=jnp.float32) * inv_cnt
        m2_l = jnp.dot(ss_wc, P, preferred_element_type=jnp.float32) * inv_cnt
        inv_l = jax.lax.rsqrt(m2_l - mean_l * mean_l + EPS)
        return jnp.maximum((y - mean_l) * (inv_l * gamma_l) + beta_l, 0.0)

    # conv1 -> BN -> ReLU  (conv bias omitted: it cancels under batch-stat BN)
    a1 = bn_relu(conv3(xh_ref, b1_ref), pc[0:1, :], pc[1:2, :])

    # Stage the intermediate in the persistent H-padded VMEM scratch (no value concat):
    # zero the two halo rows once, write the activation rows, stream conv2 from it.
    zrow = jnp.zeros((N, 1, WCo), jnp.bfloat16)
    mid_ref[:, 0:1, :] = zrow
    mid_ref[:, H + 1:H + 2, :] = zrow
    mid_ref[:, 1:H + 1, :] = a1.reshape(N, H, WCo).astype(jnp.bfloat16)

    # conv2 -> BN -> ReLU
    o_ref[...] = bn_relu(conv3(mid_ref, b2_ref), pc[2:3, :], pc[3:4, :])


def prepare_params(params, W):
    """One-time host-side prep: banded weights, BN fold matrix, packed gamma/beta."""
    w1, _b1, g1, be1, w2, _b2, g2, be2 = params      # biases cancel under batch-stat BN
    Cout = w1.shape[-1]
    WCo = W * Cout

    B1 = band_weights_per_tap(w1.astype(jnp.float32), W).astype(jnp.bfloat16)
    B2 = band_weights_per_tap(w2.astype(jnp.float32), W).astype(jnp.bfloat16)

    r = jnp.arange(WCo)
    P = (r[:, None] % Cout == r[None, :] % Cout).astype(jnp.float32)   # (WCo, WCo)

    pc = jnp.stack([jnp.tile(g1.astype(jnp.float32), W),
                    jnp.tile(be1.astype(jnp.float32), W),
                    jnp.tile(g2.astype(jnp.float32), W),
                    jnp.tile(be2.astype(jnp.float32), W)], axis=0)     # (4, WCo)

    return B1, B2, P, pc, Cout


def inconv_forward(x_nchw, prepared):
    """x_nchw: (N, Cin, H, W) float32; prepared from prepare_params()."""
    B1, B2, P, pc, Cout = prepared
    N, Cin, H, W = x_nchw.shape
    WCo = W * Cout

    # NCHW -> (N, H, W*Cin) bf16; pad H by 1 (W padding is encoded in the banded weights)
    x = jnp.transpose(x_nchw, (0, 2, 3, 1)).astype(jnp.float32)
    xh = jnp.pad(x.reshape(N, H, W * Cin),
                 ((0, 0), (1, 1), (0, 0))).astype(jnp.bfloat16)

    kernel = functools.partial(double_conv_kernel, count=float(N * H * W))
    args = (xh, B1, B2, P, pc)

    def full_spec(shape):
        return pl.BlockSpec(shape, lambda i: (0,) * len(shape))

    out = pl.pallas_call(
        kernel,
        out_shape=jax.ShapeDtypeStruct((N * H, WCo), jnp.float32),
        grid=(1,),
        in_specs=[full_spec(a.shape) for a in args],
        out_specs=full_spec((N * H, WCo)),
        scratch_shapes=[pltpu.VMEM((N, H + 2, WCo), jnp.bfloat16)],
        compiler_params=pltpu.CompilerParams(
            dimension_semantics=("arbitrary",),
            vmem_limit_bytes=32 * 1024 * 1024),
    )(*args)

    return jnp.transpose(out.reshape(N, H, W, Cout), (0, 3, 1, 2))     # -> NCHW


def init_params(key, in_ch, out_ch):
    """Deterministic synthetic parameters (conv weights stored as HWIO)."""
    ks = jax.random.split(key, 8)
    k1 = 1.0 / jnp.sqrt(in_ch * 9.0)
    k2 = 1.0 / jnp.sqrt(out_ch * 9.0)
    w1 = jax.random.uniform(ks[0], (3, 3, in_ch, out_ch), jnp.float32, -k1, k1)
    b1 = jax.random.uniform(ks[1], (out_ch,), jnp.float32, -k1, k1)
    g1 = 1.0 + 0.1 * jax.random.normal(ks[2], (out_ch,), jnp.float32)
    be1 = 0.1 * jax.random.normal(ks[3], (out_ch,), jnp.float32)
    w2 = jax.random.uniform(ks[4], (3, 3, out_ch, out_ch), jnp.float32, -k2, k2)
    b2 = jax.random.uniform(ks[5], (out_ch,), jnp.float32, -k2, k2)
    g2 = 1.0 + 0.1 * jax.random.normal(ks[6], (out_ch,), jnp.float32)
    be2 = 0.1 * jax.random.normal(ks[7], (out_ch,), jnp.float32)
    return (w1, b1, g1, be1, w2, b2, g2, be2)


def reference_forward(x_nchw, params):
    """Pure-JAX f32 reference (conv w/ bias + training-mode BN + ReLU, twice)."""
    w1, b1, g1, be1, w2, b2, g2, be2 = params
    x = jnp.transpose(x_nchw, (0, 2, 3, 1)).astype(jnp.float32)
    dn = ('NHWC', 'HWIO', 'NHWC')

    def bn_relu(y, g, be):
        mean = jnp.mean(y, axis=(0, 1, 2), keepdims=True)
        var = jnp.mean((y - mean) ** 2, axis=(0, 1, 2), keepdims=True)
        return jnp.maximum((y - mean) * jax.lax.rsqrt(var + EPS) * g + be, 0.0)

    def block(x, w, b, g, be):
        y = jax.lax.conv_general_dilated(x, w, (1, 1), 'SAME',
                                         dimension_numbers=dn) + b.reshape(1, 1, 1, -1)
        return bn_relu(y, g.reshape(1, 1, 1, -1), be.reshape(1, 1, 1, -1))

    y = block(x, w1, b1, g1, be1)
    y = block(y, w2, b2, g2, be2)
    return jnp.transpose(y, (0, 3, 1, 2))


if __name__ == "__main__":
    key = jax.random.PRNGKey(0)
    kx, kp = jax.random.split(key)

    N, Cin, Cout, H, W = 2, 4, 8, 16, 16
    x = jax.random.normal(kx, (N, Cin, H, W), jnp.float32)
    params = init_params(kp, Cin, Cout)
    prepared = prepare_params(params, W)

    out = jax.block_until_ready(inconv_forward(x, prepared))
    ref = jax.block_until_ready(reference_forward(x, params))

    assert out.shape == (N, Cout, H, W)
    max_err = float(jnp.max(jnp.abs(out - ref)))
    # kernel uses bf16 MXU operands + bf16 intermediate (f32 accumulation & BN math);
    # f32 reference -> loose tolerance
    assert max_err < 5e-2, f"mismatch vs reference: {max_err}"

    print("KERNEL_OK")
</pallas_src>

<mosaic_0001>
module attributes {stable_mosaic.version = 11 : i64} {
  func.func @double_conv_kernel(%arg0: i32, %arg1: memref<2x18x64xbf16, #tpu.memory_space<vmem>>, %arg2: memref<3x64x128xbf16, #tpu.memory_space<vmem>>, %arg3: memref<3x128x128xbf16, #tpu.memory_space<vmem>>, %arg4: memref<128x128xf32, #tpu.memory_space<vmem>>, %arg5: memref<4x128xf32, #tpu.memory_space<vmem>>, %arg6: memref<32x128xf32, #tpu.memory_space<vmem>>, %arg7: memref<2x18x128xbf16, #tpu.memory_space<vmem>>) attributes {dimension_semantics = [#tpu.dimension_semantics<arbitrary>], iteration_bounds = array<i64: 1>, scalar_prefetch = 0 : i64, scratch_operands = 1 : i64, tpu.core_type = #tpu.core_type<tc>, window_params = [{pipeline_mode = #tpu.pipeline_mode<synchronous>, transform_indices = @transform_0, window_bounds = array<i64: 2, 18, 64>}, {pipeline_mode = #tpu.pipeline_mode<synchronous>, transform_indices = @transform_1, window_bounds = array<i64: 3, 64, 128>}, {pipeline_mode = #tpu.pipeline_mode<synchronous>, transform_indices = @transform_2, window_bounds = array<i64: 3, 128, 128>}, {pipeline_mode = #tpu.pipeline_mode<synchronous>, transform_indices = @transform_3, window_bounds = array<i64: 128, 128>}, {pipeline_mode = #tpu.pipeline_mode<synchronous>, transform_indices = @transform_4, window_bounds = array<i64: 4, 128>}, {pipeline_mode = #tpu.pipeline_mode<synchronous>, transform_indices = @transform_5, window_bounds = array<i64: 32, 128>}]} {
    %c0 = arith.constant 0 : index
    %c0_0 = arith.constant 0 : index
    %0 = vector.load %arg4[%c0, %c0_0] : memref<128x128xf32, #tpu.memory_space<vmem>>, vector<128x128xf32>
    %c0_1 = arith.constant 0 : index
    %c0_2 = arith.constant 0 : index
    %1 = vector.load %arg5[%c0_1, %c0_2] : memref<4x128xf32, #tpu.memory_space<vmem>>, vector<4x128xf32>
    %c0_3 = arith.constant 0 : index
    %c0_4 = arith.constant 0 : index
    %c0_5 = arith.constant 0 : index
    %2 = vector.load %arg1[%c0_3, %c0_4, %c0_5] : memref<2x18x64xbf16, #tpu.memory_space<vmem>>, vector<2x16x64xbf16>
    %3 = vector.shape_cast %2 : vector<2x16x64xbf16> to vector<32x64xbf16>
    %c0_6 = arith.constant 0 : index
    %c0_7 = arith.constant 0 : index
    %c0_8 = arith.constant 0 : index
    %4 = vector.load %arg2[%c0_6, %c0_7, %c0_8] : memref<3x64x128xbf16, #tpu.memory_space<vmem>>, vector<1x64x128xbf16>
    %5 = vector.shape_cast %4 : vector<1x64x128xbf16> to vector<64x128xbf16>
    %cst = arith.constant dense<0.000000e+00> : vector<32x128xf32>
    %6 = tpu.matmul %3, %5, %cst {dimension_numbers = #tpu.dot_dimension_numbers<[1], [0], [0], [1], [0, 0, 1, 1], [], []>} : vector<32x64xbf16>, vector<64x128xbf16>, vector<32x128xf32> -> vector<32x128xf32>
    %c0_9 = arith.constant 0 : index
    %c1 = arith.constant 1 : index
    %c0_10 = arith.constant 0 : index
    %7 = vector.load %arg1[%c0_9, %c1, %c0_10] : memref<2x18x64xbf16, #tpu.memory_space<vmem>>, vector<2x16x64xbf16>
    %8 = vector.shape_cast %7 : vector<2x16x64xbf16> to vector<32x64xbf16>
    %c1_11 = arith.constant 1 : index
    %c0_12 = arith.constant 0 : index
    %c0_13 = arith.constant 0 : index
    %9 = vector.load %arg2[%c1_11, %c0_12, %c0_13] : memref<3x64x128xbf16, #tpu.memory_space<vmem>>, vector<1x64x128xbf16>
    %10 = vector.shape_cast %9 : vector<1x64x128xbf16> to vector<64x128xbf16>
    %cst_14 = arith.constant dense<0.000000e+00> : vector<32x128xf32>
    %11 = tpu.matmul %8, %10, %cst_14 {dimension_numbers = #tpu.dot_dimension_numbers<[1], [0], [0], [1], [0, 0, 1, 1], [], []>} : vector<32x64xbf16>, vector<64x128xbf16>, vector<32x128xf32> -> vector<32x128xf32>
    %12 = arith.addf %6, %11 : vector<32x128xf32>
    %c0_15 = arith.constant 0 : index
    %c2 = arith.constant 2 : index
    %c0_16 = arith.constant 0 : index
    %13 = vector.load %arg1[%c0_15, %c2, %c0_16] : memref<2x18x64xbf16, #tpu.memory_space<vmem>>, vector<2x16x64xbf16>
    %14 = vector.shape_cast %13 : vector<2x16x64xbf16> to vector<32x64xbf16>
    %c2_17 = arith.constant 2 : index
    %c0_18 = arith.constant 0 : index
    %c0_19 = arith.constant 0 : index
    %15 = vector.load %arg2[%c2_17, %c0_18, %c0_19] : memref<3x64x128xbf16, #tpu.memory_space<vmem>>, vector<1x64x128xbf16>
    %16 = vector.shape_cast %15 : vector<1x64x128xbf16> to vector<64x128xbf16>
    %cst_20 = arith.constant dense<0.000000e+00> : vector<32x128xf32>
    %17 = tpu.matmul %14, %16, %cst_20 {dimension_numbers = #tpu.dot_dimension_numbers<[1], [0], [0], [1], [0, 0, 1, 1], [], []>} : vector<32x64xbf16>, vector<64x128xbf16>, vector<32x128xf32> -> vector<32x128xf32>
    %18 = arith.addf %12, %17 : vector<32x128xf32>
    %19 = vector.extract_strided_slice %1 {offsets = [0, 0], sizes = [1, 128], strides = [1, 1]} : vector<4x128xf32> to vector<1x128xf32>
    %20 = vector.extract_strided_slice %1 {offsets = [1, 0], sizes = [1, 128], strides = [1, 1]} : vector<4x128xf32> to vector<1x128xf32>
    %cst_21 = arith.constant dense<0.000000e+00> : vector<128xf32>
    %21 = vector.multi_reduction <add>, %18, %cst_21 [0] : vector<32x128xf32> to vector<128xf32>
    %22 = vector.shape_cast %21 : vector<128xf32> to vector<1x128xf32>
    %23 = arith.mulf %18, %18 : vector<32x128xf32>
    %cst_22 = arith.constant dense<0.000000e+00> : vector<128xf32>
    %24 = vector.multi_reduction <add>, %23, %cst_22 [0] : vector<32x128xf32> to vector<128xf32>
    %25 = vector.shape_cast %24 : vector<128xf32> to vector<1x128xf32>
    %cst_23 = arith.constant dense<0.000000e+00> : vector<1x128xf32>
    %26 = tpu.matmul %22, %0, %cst_23 {dimension_numbers = #tpu.dot_dimension_numbers<[1], [0], [0], [1], [0, 0, 1, 1], [], []>} : vector<1x128xf32>, vector<128x128xf32>, vector<1x128xf32> -> vector<1x128xf32>
    %cst_24 = arith.constant 0.001953125 : f32
    %27 = vector.broadcast %cst_24 : f32 to vector<1x128xf32>
    %28 = arith.mulf %26, %27 : vector<1x128xf32>
    %cst_25 = arith.constant dense<0.000000e+00> : vector<1x128xf32>
    %29 = tpu.matmul %25, %0, %cst_25 {dimension_numbers = #tpu.dot_dimension_numbers<[1], [0], [0], [1], [0, 0, 1, 1], [], []>} : vector<1x128xf32>, vector<128x128xf32>, vector<1x128xf32> -> vector<1x128xf32>
    %cst_26 = arith.constant 0.001953125 : f32
    %30 = vector.broadcast %cst_26 : f32 to vector<1x128xf32>
    %31 = arith.mulf %29, %30 : vector<1x128xf32>
    %32 = arith.mulf %28, %28 : vector<1x128xf32>
    %33 = arith.subf %31, %32 : vector<1x128xf32>
    %cst_27 = arith.constant 9.99999974E-6 : f32
    %34 = vector.broadcast %cst_27 : f32 to vector<1x128xf32>
    %35 = arith.addf %33, %34 : vector<1x128xf32>
    %36 = math.rsqrt %35 : vector<1x128xf32>
    %37 = vector.broadcast %28 : vector<1x128xf32> to vector<32x128xf32>
    %38 = arith.subf %18, %37 : vector<32x128xf32>
    %39 = arith.mulf %36, %19 : vector<1x128xf32>
    %40 = vector.broadcast %39 : vector<1x128xf32> to vector<32x128xf32>
    %41 = arith.mulf %38, %40 : vector<32x128xf32>
    %42 = vector.broadcast %20 : vector<1x128xf32> to vector<32x128xf32>
    %43 = arith.addf %41, %42 : vector<32x128xf32>
    %cst_28 = arith.constant 0.000000e+00 : f32
    %44 = vector.broadcast %cst_28 : f32 to vector<32x128xf32>
    %45 = arith.maximumf %43, %44 : vector<32x128xf32>
    %cst_29 = arith.constant 0.000000e+00 : bf16
    %46 = vector.broadcast %cst_29 : bf16 to vector<2x1x128xbf16>
    %c0_30 = arith.constant 0 : index
    %c0_31 = arith.constant 0 : index
    %c0_32 = arith.constant 0 : index
    %47 = vector.load %arg7[%c0_30, %c0_31, %c0_32] : memref<2x18x128xbf16, #tpu.memory_space<vmem>>, vector<2x1x128xbf16>
    tpu.vector_store %arg7[%c0_30, %c0_31, %c0_32], %46 {strides = array<i32>} : memref<2x18x128xbf16, #tpu.memory_space<vmem>>, vector<2x1x128xbf16>,
    %c0_33 = arith.constant 0 : index
    %c17 = arith.constant 17 : index
    %c0_34 = arith.constant 0 : index
    %48 = vector.load %arg7[%c0_33, %c17, %c0_34] : memref<2x18x128xbf16, #tpu.memory_space<vmem>>, vector<2x1x128xbf16>
    tpu.vector_store %arg7[%c0_33, %c17, %c0_34], %46 {strides = array<i32>} : memref<2x18x128xbf16, #tpu.memory_space<vmem>>, vector<2x1x128xbf16>,
    %49 = vector.shape_cast %45 : vector<32x128xf32> to vector<2x16x128xf32>
    %50 = arith.truncf %49 : vector<2x16x128xf32> to vector<2x16x128xbf16>
    %c0_35 = arith.constant 0 : index
    %c1_36 = arith.constant 1 : index
    %c0_37 = arith.constant 0 : index
    %51 = vector.load %arg7[%c0_35, %c1_36, %c0_37] : memref<2x18x128xbf16, #tpu.memory_space<vmem>>, vector<2x16x128xbf16>
    tpu.vector_store %arg7[%c0_35, %c1_36, %c0_37], %50 {strides = array<i32>} : memref<2x18x128xbf16, #tpu.memory_space<vmem>>, vector<2x16x128xbf16>,
    %c0_38 = arith.constant 0 : index
    %c0_39 = arith.constant 0 : index
    %c0_40 = arith.constant 0 : index
    %52 = vector.load %arg7[%c0_38, %c0_39, %c0_40] : memref<2x18x128xbf16, #tpu.memory_space<vmem>>, vector<2x16x128xbf16>
    %53 = vector.shape_cast %52 : vector<2x16x128xbf16> to vector<32x128xbf16>
    %c0_41 = arith.constant 0 : index
    %c0_42 = arith.constant 0 : index
    %c0_43 = arith.constant 0 : index
    %54 = vector.load %arg3[%c0_41, %c0_42, %c0_43] : memref<3x128x128xbf16, #tpu.memory_space<vmem>>, vector<1x128x128xbf16>
    %55 = vector.shape_cast %54 : vector<1x128x128xbf16> to vector<128x128xbf16>
    %cst_44 = arith.constant dense<0.000000e+00> : vector<32x128xf32>
    %56 = tpu.matmul %53, %55, %cst_44 {dimension_numbers = #tpu.dot_dimension_numbers<[1], [0], [0], [1], [0, 0, 1, 1], [], []>} : vector<32x128xbf16>, vector<128x128xbf16>, vector<32x128xf32> -> vector<32x128xf32>
    %c0_45 = arith.constant 0 : index
    %c1_46 = arith.constant 1 : index
    %c0_47 = arith.constant 0 : index
    %57 = vector.load %arg7[%c0_45, %c1_46, %c0_47] : memref<2x18x128xbf16, #tpu.memory_space<vmem>>, vector<2x16x128xbf16>
    %58 = vector.shape_cast %57 : vector<2x16x128xbf16> to vector<32x128xbf16>
    %c1_48 = arith.constant 1 : index
    %c0_49 = arith.constant 0 : index
    %c0_50 = arith.constant 0 : index
    %59 = vector.load %arg3[%c1_48, %c0_49, %c0_50] : memref<3x128x128xbf16, #tpu.memory_space<vmem>>, vector<1x128x128xbf16>
    %60 = vector.shape_cast %59 : vector<1x128x128xbf16> to vector<128x128xbf16>
    %cst_51 = arith.constant dense<0.000000e+00> : vector<32x128xf32>
    %61 = tpu.matmul %58, %60, %cst_51 {dimension_numbers = #tpu.dot_dimension_numbers<[1], [0], [0], [1], [0, 0, 1, 1], [], []>} : vector<32x128xbf16>, vector<128x128xbf16>, vector<32x128xf32> -> vector<32x128xf32>
    %62 = arith.addf %56, %61 : vector<32x128xf32>
    %c0_52 = arith.constant 0 : index
    %c2_53 = arith.constant 2 : index
    %c0_54 = arith.constant 0 : index
    %63 = vector.load %arg7[%c0_52, %c2_53, %c0_54] : memref<2x18x128xbf16, #tpu.memory_space<vmem>>, vector<2x16x128xbf16>
    %64 = vector.shape_cast %63 : vector<2x16x128xbf16> to vector<32x128xbf16>
    %c2_55 = arith.constant 2 : index
    %c0_56 = arith.constant 0 : index
    %c0_57 = arith.constant 0 : index
    %65 = vector.load %arg3[%c2_55, %c0_56, %c0_57] : memref<3x128x128xbf16, #tpu.memory_space<vmem>>, vector<1x128x128xbf16>
    %66 = vector.shape_cast %65 : vector<1x128x128xbf16> to vector<128x128xbf16>
    %cst_58 = arith.constant dense<0.000000e+00> : vector<32x128xf32>
    %67 = tpu.matmul %64, %66, %cst_58 {dimension_numbers = #tpu.dot_dimension_numbers<[1], [0], [0], [1], [0, 0, 1, 1], [], []>} : vector<32x128xbf16>, vector<128x128xbf16>, vector<32x128xf32> -> vector<32x128xf32>
    %68 = arith.addf %62, %67 : vector<32x128xf32>
    %69 = vector.extract_strided_slice %1 {offsets = [2, 0], sizes = [1, 128], strides = [1, 1]} : vector<4x128xf32> to vector<1x128xf32>
    %70 = vector.extract_strided_slice %1 {offsets = [3, 0], sizes = [1, 128], strides = [1, 1]} : vector<4x128xf32> to vector<1x128xf32>
    %cst_59 = arith.constant dense<0.000000e+00> : vector<128xf32>
    %71 = vector.multi_reduction <add>, %68, %cst_59 [0] : vector<32x128xf32> to vector<128xf32>
    %72 = vector.shape_cast %71 : vector<128xf32> to vector<1x128xf32>
    %73 = arith.mulf %68, %68 : vector<32x128xf32>
    %cst_60 = arith.constant dense<0.000000e+00> : vector<128xf32>
    %74 = vector.multi_reduction <add>, %73, %cst_60 [0] : vector<32x128xf32> to vector<128xf32>
    %75 = vector.shape_cast %74 : vector<128xf32> to vector<1x128xf32>
    %cst_61 = arith.constant dense<0.000000e+00> : vector<1x128xf32>
    %76 = tpu.matmul %72, %0, %cst_61 {dimension_numbers = #tpu.dot_dimension_numbers<[1], [0], [0], [1], [0, 0, 1, 1], [], []>} : vector<1x128xf32>, vector<128x128xf32>, vector<1x128xf32> -> vector<1x128xf32>
    %cst_62 = arith.constant 0.001953125 : f32
    %77 = vector.broadcast %cst_62 : f32 to vector<1x128xf32>
    %78 = arith.mulf %76, %77 : vector<1x128xf32>
    %cst_63 = arith.constant dense<0.000000e+00> : vector<1x128xf32>
    %79 = tpu.matmul %75, %0, %cst_63 {dimension_numbers = #tpu.dot_dimension_numbers<[1], [0], [0], [1], [0, 0, 1, 1], [], []>} : vector<1x128xf32>, vector<128x128xf32>, vector<1x128xf32> -> vector<1x128xf32>
    %cst_64 = arith.constant 0.001953125 : f32
    %80 = vector.broadcast %cst_64 : f32 to vector<1x128xf32>
    %81 = arith.mulf %79, %80 : vector<1x128xf32>
    %82 = arith.mulf %78, %78 : vector<1x128xf32>
    %83 = arith.subf %81, %82 : vector<1x128xf32>
    %cst_65 = arith.constant 9.99999974E-6 : f32
    %84 = vector.broadcast %cst_65 : f32 to vector<1x128xf32>
    %85 = arith.addf %83, %84 : vector<1x128xf32>
    %86 = math.rsqrt %85 : vector<1x128xf32>
    %87 = vector.broadcast %78 : vector<1x128xf32> to vector<32x128xf32>
    %88 = arith.subf %68, %87 : vector<32x128xf32>
    %89 = arith.mulf %86, %69 : vector<1x128xf32>
    %90 = vector.broadcast %89 : vector<1x128xf32> to vector<32x128xf32>
    %91 = arith.mulf %88, %90 : vector<32x128xf32>
    %92 = vector.broadcast %70 : vector<1x128xf32> to vector<32x128xf32>
    %93 = arith.addf %91, %92 : vector<32x128xf32>
    %cst_66 = arith.constant 0.000000e+00 : f32
    %94 = vector.broadcast %cst_66 : f32 to vector<32x128xf32>
    %95 = arith.maximumf %93, %94 : vector<32x128xf32>
    %c0_67 = arith.constant 0 : index
    %c0_68 = arith.constant 0 : index
    %96 = vector.load %arg6[%c0_67, %c0_68] : memref<32x128xf32, #tpu.memory_space<vmem>>, vector<32x128xf32>
    tpu.vector_store %arg6[%c0_67, %c0_68], %95 {strides = array<i32>} : memref<32x128xf32, #tpu.memory_space<vmem>>, vector<32x128xf32>,
    return
  }
  func.func @transform_0(%arg0: i32) -> (i32, i32, i32) {
    %c0_i32 = arith.constant 0 : i32
    %c0_i32_0 = arith.constant 0 : i32
    %c0_i32_1 = arith.constant 0 : i32
    %c0_i32_2 = arith.constant 0 : i32
    return %c0_i32, %c0_i32_0, %c0_i32_1 : i32, i32, i32
  }
  func.func @transform_1(%arg0: i32) -> (i32, i32, i32) {
    %c0_i32 = arith.constant 0 : i32
    %c0_i32_0 = arith.constant 0 : i32
    %c0_i32_1 = arith.constant 0 : i32
    %c0_i32_2 = arith.constant 0 : i32
    return %c0_i32, %c0_i32_0, %c0_i32_1 : i32, i32, i32
  }
  func.func @transform_2(%arg0: i32) -> (i32, i32, i32) {
    %c0_i32 = arith.constant 0 : i32
    %c0_i32_0 = arith.constant 0 : i32
    %c0_i32_1 = arith.constant 0 : i32
    %c0_i32_2 = arith.constant 0 : i32
    return %c0_i32, %c0_i32_0, %c0_i32_1 : i32, i32, i32
  }
  func.func @transform_3(%arg0: i32) -> (i32, i32) {
    %c0_i32 = arith.constant 0 : i32
    %c0_i32_0 = arith.constant 0 : i32
    %c0_i32_1 = arith.constant 0 : i32
    return %c0_i32, %c0_i32_0 : i32, i32
  }
  func.func @transform_4(%arg0: i32) -> (i32, i32) {
    %c0_i32 = arith.constant 0 : i32
    %c0_i32_0 = arith.constant 0 : i32
    %c0_i32_1 = arith.constant 0 : i32
    return %c0_i32, %c0_i32_0 : i32, i32
  }
  func.func @transform_5(%arg0: i32) -> (i32, i32) {
    %c0_i32 = arith.constant 0 : i32
    %c0_i32_0 = arith.constant 0 : i32
    %c0_i32_1 = arith.constant 0 : i32
    return %c0_i32, %c0_i32_0 : i32, i32
  }
}

</mosaic_0001>

<llo_original>
// kernel: tpu_custom_call.1
$region0: #{tpu_custom_call.1}
  #allocation0 [shape = 'u32[]', space=smem, size = 0x4, offset = 0x4, fixed_abs, tag = 'smem constant byte address 0x4 - core index']
  #allocation1 [shape = 'u32[72,128]{1,0:T(1,128)}', space=vmem, size = 0x9000, scoped, tag = 'internal scratch']
  #allocation2 [shape = 'bf16[2,18,128]{2,1,0:T(8,128)(2,1)}', space=vmem, size = 0x3000, scoped, tag = 'scratch operand']
  %s0 = inlined_call_operand.vmem [shape: bf16[2,18,64], index: 0, kind: input, shape index: {}]
  %s1 = inlined_call_operand.hbm [shape: bf16[3,64,128], index: 1, kind: input, shape index: {}]
  %s2 = inlined_call_operand.hbm [shape: bf16[3,128,128], index: 2, kind: input, shape index: {}]
  %s3 = inlined_call_operand.hbm [shape: f32[128,128], index: 3, kind: input, shape index: {}]
  %s4 = inlined_call_operand.vmem [shape: f32[4,128], index: 4, kind: input, shape index: {}]
  %s5 = inlined_call_operand.hbm [shape: f32[32,128], index: 5, kind: output, shape index: {}]
  %s6 = sld [smem:[#allocation0]]
  $region42: #{tpu_custom_call.1} parent=0
    _
  %s8 = ssub.s32 1, %s6
  %s9 = scalar_select 0, %s8, %s6
  $region1: #{tpu_custom_call.1} parent=0
    #allocation3 [shape = 'u8[49152]{0}', space=vmem, size = 0xc000, scoped, tag = 'input window, operand 1, single buffered']
    #allocation4 [shape = 's32[1]{0}', space=sflag, size = 0x4, scoped, tag = 'scoped memory for tpu_custom_call.1']
    #allocation5 [shape = 's32[1]{0}', space=sflag, size = 0x4, scoped, tag = 'scoped memory for tpu_custom_call.1']
    #allocation6 [shape = 'u8[98304]{0}', space=vmem, size = 0x18000, scoped, tag = 'input window, operand 2, single buffered']
    #allocation7 [shape = 's32[1]{0}', space=sflag, size = 0x4, scoped, tag = 'scoped memory for tpu_custom_call.1']
    #allocation8 [shape = 'u8[65536]{0}', space=vmem, size = 0x10000, scoped, tag = 'input window, operand 3, single buffered']
    #allocation9 [shape = 'u8[16384]{0}', space=vmem, size = 0x4000, scoped, tag = 'output window, operand 0, single buffered']
    %10 = vsyncpa [#allocation4], 0
    %11 = vsyncpa [#allocation7], 0
    %12 = vsyncpa [#allocation5], 0
    // Predicated region
    $region2: #{tpu_custom_call.1} parent=1 // pred_check
      _
    $region3: #{tpu_custom_call.1} parent=1 // pred_check_branch
      %14 = sbr.rel (0) target = $region5
    $region4: #{tpu_custom_call.1} parent=1 // pred_region
      _
    $region5: #{tpu_custom_call.1} parent=1 // pred_fallthru
      _
    // Predicated region
    $region6: #{tpu_custom_call.1} parent=1 // pred_check
      _
    $region7: #{tpu_custom_call.1} parent=1 // pred_check_branch
      %16 = sbr.rel (0) target = $region9
    $region8: #{tpu_custom_call.1} parent=1 // pred_region
      %18 = vsyncadd [#allocation4], 0
      %s19 = sshll.u32 %s1, 4
      %s20 = int_to_ptr.hbm [resolvable:$true] %s19
      %s21 = sshll.u32 [#allocation3], 4
      %s22 = int_to_ptr.vmem [resolvable:$true] %s21
      %27 = dma.hbm_to_vmem [thread:$0]  %s20, 1536, %s22, [#allocation4], 64, 64, 4
    $region9: #{tpu_custom_call.1} parent=1 // pred_fallthru
      _
    // Predicated region
    $region10: #{tpu_custom_call.1} parent=1 // pred_check
      _
    $region11: #{tpu_custom_call.1} parent=1 // pred_check_branch
      %29 = sbr.rel (0) target = $region13
    $region12: #{tpu_custom_call.1} parent=1 // pred_region
      %31 = vsyncadd [#allocation7], 0
      %s32 = sshll.u32 %s2, 4
      %s33 = int_to_ptr.hbm [resolvable:$true] %s32
      %s34 = sshll.u32 [#allocation6], 4
      %s35 = int_to_ptr.vmem [resolvable:$true] %s34
      %40 = dma.hbm_to_vmem [thread:$0]  %s33, 3072, %s35, [#allocation7], 64, 64, 4
    $region13: #{tpu_custom_call.1} parent=1 // pred_fallthru
      _
    // Predicated region
    $region14: #{tpu_custom_call.1} parent=1 // pred_check
      _
    $region15: #{tpu_custom_call.1} parent=1 // pred_check_branch
      %42 = sbr.rel (0) target = $region17
    $region16: #{tpu_custom_call.1} parent=1 // pred_region
      %44 = vsyncadd [#allocation7], 0
      %s45 = sshll.u32 %s3, 4
      %s46 = int_to_ptr.hbm [resolvable:$true] %s45
      %s47 = sshll.u32 [#allocation8], 4
      %s48 = int_to_ptr.vmem [resolvable:$true] %s47
      %53 = dma.hbm_to_vmem [thread:$0]  %s46, 2048, %s48, [#allocation7], 128, 128, 8
    $region17: #{tpu_custom_call.1} parent=1 // pred_fallthru
      _
    // Predicated region
    $region18: #{tpu_custom_call.1} parent=1 // pred_check
      _
    $region19: #{tpu_custom_call.1} parent=1 // pred_check_branch
      %55 = sbr.rel (0) target = $region21
    $region20: #{tpu_custom_call.1} parent=1 // pred_region
      _
    $region21: #{tpu_custom_call.1} parent=1 // pred_fallthru
      _
    // Predicated region
    $region22: #{tpu_custom_call.1} parent=1 // pred_check
      _
    $region23: #{tpu_custom_call.1} parent=1 // pred_check_branch
      %57 = sbr.rel (0) target = $region25
    $region24: #{tpu_custom_call.1} parent=1 // pred_region
      %59 = dma.done [#allocation4], 1536
    $region25: #{tpu_custom_call.1} parent=1 // pred_fallthru
      _
    // Predicated region
    $region26: #{tpu_custom_call.1} parent=1 // pred_check
      _
    $region27: #{tpu_custom_call.1} parent=1 // pred_check_branch
      %61 = sbr.rel (0) target = $region29
    $region28: #{tpu_custom_call.1} parent=1 // pred_region
      %63 = dma.done [#allocation7], 3072
    $region29: #{tpu_custom_call.1} parent=1 // pred_fallthru
      _
    // Predicated region
    $region30: #{tpu_custom_call.1} parent=1 // pred_check
      _
    $region31: #{tpu_custom_call.1} parent=1 // pred_check_branch
      %65 = sbr.rel (0) target = $region33
    $region32: #{tpu_custom_call.1} parent=1 // pred_region
      %67 = dma.done [#allocation7], 2048
    $region33: #{tpu_custom_call.1} parent=1 // pred_fallthru
      _
    %v69 = vld [vmem:[#allocation8] sm:$0xff]
    %v70 = vld [vmem:[#allocation8 + $0x8] sm:$0xff]
    %v71 = vld [vmem:[#allocation8 + $0x10] sm:$0xff]
    %v72 = vld [vmem:[#allocation8 + $0x18] sm:$0xff]
    %v73 = vld [vmem:[#allocation8 + $0x20] sm:$0xff]
    %v74 = vld [vmem:[#allocation8 + $0x28] sm:$0xff]
    %v75 = vld [vmem:[#allocation8 + $0x30] sm:$0xff]
    %v76 = vld [vmem:[#allocation8 + $0x38] sm:$0xff]
    %v77 = vld [vmem:[#allocation8 + $0x40] sm:$0xff]
    %v78 = vld [vmem:[#allocation8 + $0x48] sm:$0xff]
    %v79 = vld [vmem:[#allocation8 + $0x50] sm:$0xff]
    %v80 = vld [vmem:[#allocation8 + $0x58] sm:$0xff]
    %v81 = vld [vmem:[#allocation8 + $0x60] sm:$0xff]
    %v82 = vld [vmem:[#allocation8 + $0x68] sm:$0xff]
    %v83 = vld [vmem:[#allocation8 + $0x70] sm:$0xff]
    %v84 = vld [vmem:[#allocation8 + $0x78] sm:$0xff]
    %v85 = vld [vmem:[%s4] sm:$0xf]
    %v86 = vld [vmem:[%s0] sm:$0xf]
    %v87 = vld [vmem:[%s0 + $0x4] sm:$0xf]
    %v88 = vld [vmem:[%s0 + $0xc] sm:$0xf]
    %v89 = vld [vmem:[%s0 + $0x10] sm:$0xf]
    %v90 = vld [vmem:[#allocation3] sm:$0xf]
    %v91 = vld [vmem:[#allocation3 + $0x4] sm:$0xf]
    %v92 = vld [vmem:[#allocation3 + $0x8] sm:$0xf]
    %v93 = vld [vmem:[#allocation3 + $0xc] sm:$0xf]
    %v94 = vld [vmem:[#allocation3 + $0x10] sm:$0xf]
    %v95 = vld [vmem:[#allocation3 + $0x14] sm:$0xf]
    %v96 = vld [vmem:[#allocation3 + $0x18] sm:$0xf]
    %v97 = vld [vmem:[#allocation3 + $0x1c] sm:$0xf]
    %v98 = vld [vmem:[%s0 + $0x8] sm:$0x1]
    %v99 = vld [vmem:[%s0 + $0x14] sm:$0x1]
    %vm100 = vsmask.f32 3328
    %vm101 = vsmask.f32 7440
    %vm102 = vmor %vm100, %vm101
    %v104 = vshrl.u32 %v86, 16
    %v106 = vrot.slane %v104, 4
    %v107 = vshll.u32 %v86, 16
    %v109 = vrot.slane %v107, 5
    %v110 = vor.u32 %v106, %v109
    %v111 = vrot.slane %v110, 4
    %v113 = vshll.u32 %v87, 16
    %v115 = vrot.slane %v113, 5
    %v116 = vsel %vm102, %v111, %v115
    %v117 = vshrl.u32 %v87, 16
    %v119 = vrot.slane %v117, 4
    %v120 = vor.u32 %v119, %v115
    %v121 = vrot.slane %v120, 4
    %v123 = vshll.u32 %v98, 16
    %v125 = vrot.slane %v123, 5
    %v126 = vsel %vm102, %v121, %v125
    %v128 = vshrl.u32 %v88, 16
    %v130 = vrot.slane %v128, 4
    %v131 = vshll.u32 %v88, 16
    %v133 = vrot.slane %v131, 5
    %v134 = vor.u32 %v130, %v133
    %v135 = vrot.slane %v134, 4
    %v137 = vshll.u32 %v89, 16
    %v139 = vrot.slane %v137, 5
    %v140 = vsel %vm102, %v135, %v139
    %v141 = vshrl.u32 %v89, 16
    %v143 = vrot.slane %v141, 4
    %v144 = vor.u32 %v143, %v139
    %v145 = vrot.slane %v144, 4
    %v147 = vshll.u32 %v99, 16
    %v149 = vrot.slane %v147, 5
    %v150 = vsel %vm102, %v145, %v149
    %s151 = scalar_lea.vmem [#allocation3], 32
    %v152 = vld [vmem:[%s151] sm:$0xf]
    %v153 = vld [vmem:[%s151 + $0x4] sm:$0xf]
    %v154 = vld [vmem:[%s151 + $0x8] sm:$0xf]
    %v155 = vld [vmem:[%s151 + $0xc] sm:$0xf]
    %v156 = vld [vmem:[%s151 + $0x10] sm:$0xf]
    %v157 = vld [vmem:[%s151 + $0x14] sm:$0xf]
    %v158 = vld [vmem:[%s151 + $0x18] sm:$0xf]
    %v159 = vld [vmem:[%s151 + $0x1c] sm:$0xf]
    %v160 = vunpack.c.l.b16 %v116
    %v161 = vunpack.c.l.b16 %v126
    %v162 = vunpack.c.l.b16 %v140
    %v163 = vunpack.c.l.b16 %v150
    %v164 = vpack.c.b16 %v161, %v160
    %v165 = vpack.c.b16 %v163, %v162
    %v174 = vunpack.c.l.b16 %v152
    %v175 = vunpack.c.l.b16 %v153
    %v176 = vunpack.c.l.b16 %v154
    %v177 = vunpack.c.l.b16 %v155
    %v178 = vunpack.c.l.b16 %v156
    %v179 = vunpack.c.l.b16 %v157
    %v180 = vunpack.c.l.b16 %v158
    %v181 = vunpack.c.l.b16 %v159
    %v182 = vpack.c.b16 %v175, %v174
    %v183 = vpack.c.b16 %v177, %v176
    %v184 = vpack.c.b16 %v179, %v178
    %v185 = vpack.c.b16 %v181, %v180
    %vm190 = vcmask 523264
    %v192 = vsel %vm190, %v164, 0
    %v195 = vsel %vm190, %v165, 0
    %197 = vmatpush.bf16.msra.mxu0 0
    %198 = vmatpush.bf16.msra.mxu0 0
    %199 = vmatpush.bf16.msra.mxu0 0
    %200 = vmatpush.bf16.msra.mxu0 0
    %201 = vmatpush.bf16.msra.mxu0 %v185
    %202 = vmatpush.bf16.msra.mxu0 %v184
    %203 = vmatpush.bf16.msra.mxu0 %v183
    %204 = vmatpush.bf16.msra.mxu0 %v182
    %205 = vmatmul.bf16.gmra.mxu0 %v192
    %v206 = vpop.f32.mrf.mxu0
    %v207 = vadd.f32 0.0, %v206
    %v208 = vpop.f32.mrf.mxu0
    %v209 = vadd.f32 0.0, %v208
    %210 = vmatmul.bf16.gmra.mxu0 %v195
    %v211 = vpop.f32.mrf.mxu0
    %v212 = vadd.f32 0.0, %v211
    %v213 = vpop.f32.mrf.mxu0
    %v214 = vadd.f32 0.0, %v213
    %215 = vdwg.mxu0
    %v220 = vunpack.c.l.b16 %v86
    %v221 = vunpack.c.l.b16 %v87
    %v222 = vunpack.c.l.b16 %v88
    %v223 = vunpack.c.l.b16 %v89
    %v224 = vpack.c.b16 %v221, %v220
    %v225 = vpack.c.b16 %v223, %v222
    %v234 = vunpack.c.l.b16 %v90
    %v235 = vunpack.c.l.b16 %v91
    %v236 = vunpack.c.l.b16 %v92
    %v237 = vunpack.c.l.b16 %v93
    %v238 = vunpack.c.l.b16 %v94
    %v239 = vunpack.c.l.b16 %v95
    %v240 = vunpack.c.l.b16 %v96
    %v241 = vunpack.c.l.b16 %v97
    %v242 = vpack.c.b16 %v235, %v234
    %v243 = vpack.c.b16 %v237, %v236
    %v244 = vpack.c.b16 %v239, %v238
    %v245 = vpack.c.b16 %v241, %v240
    %v251 = vsel %vm190, %v224, 0
    %v254 = vsel %vm190, %v225, 0
    %256 = vmatpush.bf16.msra.mxu0 0
    %257 = vmatpush.bf16.msra.mxu0 0
    %258 = vmatpush.bf16.msra.mxu0 0
    %259 = vmatpush.bf16.msra.mxu0 0
    %260 = vmatpush.bf16.msra.mxu0 %v245
    %261 = vmatpush.bf16.msra.mxu0 %v244
    %262 = vmatpush.bf16.msra.mxu0 %v243
    %263 = vmatpush.bf16.msra.mxu0 %v242
    %264 = vmatmul.bf16.gmra.mxu0 %v251
    %v265 = vpop.f32.mrf.mxu0
    %v266 = vadd.f32 %v207, %v265
    %v267 = vpop.f32.mrf.mxu0
    %v268 = vadd.f32 %v209, %v267
    %269 = vmatmul.bf16.gmra.mxu0 %v254
    %v270 = vpop.f32.mrf.mxu0
    %v271 = vadd.f32 %v212, %v270
    %v272 = vpop.f32.mrf.mxu0
    %v273 = vadd.f32 %v214, %v272
    %274 = vdwg.mxu0
    %v275 = vld [vmem:[%s0] sm:$0xe]
    %v276 = vld [vmem:[%s0 + $0xc] sm:$0xe]
    %vm281 = vcmask 1042432
    %vm282 = vcmask 1046532
    %vm283 = vmor %vm281, %vm282
    %v284 = vrot.slane %v275, 5
    %v285 = vrot.slane %v284, 4
    %v286 = vrot.slane %v87, 5
    %v287 = vsel %vm283, %v285, %v286
    %v288 = vrot.slane %v286, 4
    %v289 = vrot.slane %v98, 5
    %v290 = vsel %vm283, %v288, %v289
    %v291 = vrot.slane %v276, 5
    %v292 = vrot.slane %v291, 4
    %v293 = vrot.slane %v89, 5
    %v294 = vsel %vm283, %v292, %v293
    %v295 = vrot.slane %v293, 4
    %v296 = vrot.slane %v99, 5
    %v297 = vsel %vm283, %v295, %v296
    %s298 = scalar_lea.vmem [#allocation3], 64
    %v299 = vld [vmem:[%s298] sm:$0xf]
    %v300 = vld [vmem:[%s298 + $0x4] sm:$0xf]
    %v301 = vld [vmem:[%s298 + $0x8] sm:$0xf]
    %v302 = vld [vmem:[%s298 + $0xc] sm:$0xf]
    %v303 = vld [vmem:[%s298 + $0x10] sm:$0xf]
    %v304 = vld [vmem:[%s298 + $0x14] sm:$0xf]
    %v305 = vld [vmem:[%s298 + $0x18] sm:$0xf]
    %v306 = vld [vmem:[%s298 + $0x1c] sm:$0xf]
    %v307 = vunpack.c.l.b16 %v287
    %v308 = vunpack.c.l.b16 %v290
    %v309 = vunpack.c.l.b16 %v294
    %v310 = vunpack.c.l.b16 %v297
    %v311 = vpack.c.b16 %v308, %v307
    %v312 = vpack.c.b16 %v310, %v309
    %v321 = vunpack.c.l.b16 %v299
    %v322 = vunpack.c.l.b16 %v300
    %v323 = vunpack.c.l.b16 %v301
    %v324 = vunpack.c.l.b16 %v302
    %v325 = vunpack.c.l.b16 %v303
    %v326 = vunpack.c.l.b16 %v304
    %v327 = vunpack.c.l.b16 %v305
    %v328 = vunpack.c.l.b16 %v306
    %v329 = vpack.c.b16 %v322, %v321
    %v330 = vpack.c.b16 %v324, %v323
    %v331 = vpack.c.b16 %v326, %v325
    %v332 = vpack.c.b16 %v328, %v327
    %v338 = vsel %vm190, %v311, 0
    %v341 = vsel %vm190, %v312, 0
    %343 = vmatpush.bf16.msra.mxu0 0
    %344 = vmatpush.bf16.msra.mxu0 0
    %345 = vmatpush.bf16.msra.mxu0 0
    %346 = vmatpush.bf16.msra.mxu0 0
    %347 = vmatpush.bf16.msra.mxu0 %v332
    %348 = vmatpush.bf16.msra.mxu0 %v331
    %349 = vmatpush.bf16.msra.mxu0 %v330
    %350 = vmatpush.bf16.msra.mxu0 %v329
    %351 = vmatmul.bf16.gmra.mxu0 %v338
    %v352 = vpop.f32.mrf.mxu0
    %v353 = vadd.f32 0.0, %v352
    %v354 = vpop.f32.mrf.mxu0
    %v355 = vadd.f32 0.0, %v354
    %356 = vmatmul.bf16.gmra.mxu0 %v341
    %v357 = vpop.f32.mrf.mxu0
    %v358 = vadd.f32 0.0, %v357
    %v359 = vpop.f32.mrf.mxu0
    %v360 = vadd.f32 0.0, %v359
    %361 = vdwg.mxu0
    %v362 = vadd.f32 %v266, %v353
    %v363 = vadd.f32 %v268, %v355
    %v364 = vadd.f32 %v271, %v358
    %v365 = vadd.f32 %v273, %v360
    %v366 = vadd.f32 %v362, %v363
    %v367 = vadd.f32 %v366, %v364
    %v368 = vadd.f32 %v367, %v365
    %v369 = vrot.slane %v368, 4
    %v370 = vadd.f32 %v368, %v369
    %v371 = vrot.slane %v370, 2
    %v372 = vadd.f32 %v370, %v371
    %v373 = vrot.slane %v372, 1
    %v374 = vadd.f32 %v372, %v373
    %v375 = vmul.f32 %v362, %v362
    %v376 = vmul.f32 %v363, %v363
    %v377 = vmul.f32 %v364, %v364
    %v378 = vmul.f32 %v365, %v365
    %v379 = vadd.f32 %v375, %v376
    %v380 = vadd.f32 %v379, %v377
    %v381 = vadd.f32 %v380, %v378
    %v382 = vrot.slane %v381, 4
    %v383 = vadd.f32 %v381, %v382
    %v384 = vrot.slane %v383, 2
    %v385 = vadd.f32 %v383, %v384
    %v386 = vrot.slane %v385, 1
    %v387 = vadd.f32 %v385, %v386
    %388 = vmatpush.msra.mxu0 %v84
    %389 = vmatpush.msra.mxu0 %v83
    %390 = vmatpush.msra.mxu0 %v82
    %391 = vmatpush.msra.mxu0 %v81
    %392 = vmatpush.msra.mxu0 %v80
    %393 = vmatpush.msra.mxu0 %v79
    %394 = vmatpush.msra.mxu0 %v78
    %395 = vmatpush.msra.mxu0 %v77
    %396 = vmatpush.msra.mxu0 %v76
    %397 = vmatpush.msra.mxu0 %v75
    %398 = vmatpush.msra.mxu0 %v74
    %399 = vmatpush.msra.mxu0 %v73
    %400 = vmatpush.msra.mxu0 %v72
    %401 = vmatpush.msra.mxu0 %v71
    %402 = vmatpush.msra.mxu0 %v70
    %403 = vmatpush.msra.mxu0 %v69
    %404 = vmatmul.f32.gmra.mxu0 %v374
    %v405 = vpop.f32.mrf.mxu0
    %v406 = vadd.f32 0.0, %v405
    %407 = vdwg.mxu0
    %v408 = vmul.f32 %v406, 0.001953125
    %409 = vmatpush.msra.mxu0 %v84
    %410 = vmatpush.msra.mxu0 %v83
    %411 = vmatpush.msra.mxu0 %v82
    %412 = vmatpush.msra.mxu0 %v81
    %413 = vmatpush.msra.mxu0 %v80
    %414 = vmatpush.msra.mxu0 %v79
    %415 = vmatpush.msra.mxu0 %v78
    %416 = vmatpush.msra.mxu0 %v77
    %417 = vmatpush.msra.mxu0 %v76
    %418 = vmatpush.msra.mxu0 %v75
    %419 = vmatpush.msra.mxu0 %v74
    %420 = vmatpush.msra.mxu0 %v73
    %421 = vmatpush.msra.mxu0 %v72
    %422 = vmatpush.msra.mxu0 %v71
    %423 = vmatpush.msra.mxu0 %v70
    %424 = vmatpush.msra.mxu0 %v69
    %425 = vmatmul.f32.gmra.mxu0 %v387
    %v426 = vpop.f32.mrf.mxu0
    %v427 = vadd.f32 0.0, %v426
    %428 = vdwg.mxu0
    %v429 = vmul.f32 %v427, 0.001953125
    %v430 = vmul.f32 %v408, %v408
    %v431 = vsub.f32 %v429, %v430
    %v432 = vadd.f32 %v431, 1e-05
    %v433 = vrsqrt.pop %v432
    %v434 = vmul.f32 %v433, %v432
    %v435 = vmul.f32 %v434, %v433
    %v436 = vmul.f32 0.5, %v435
    %v437 = vsub.f32 1.5, %v436
    %v438 = vmul.f32 %v433, %v437
    %vm439 = vweird.f32 %v432
    %vm440 = vweird.f32 %v433
    %vm441 = vmor %vm439, %vm440
    %v442 = vsel %vm441, %v433, %v438
    %v443 = vperm.slane %v408, 0
    %v444 = vsub.f32 %v362, %v443
    %v445 = vsub.f32 %v363, %v443
    %v446 = vsub.f32 %v364, %v443
    %v447 = vsub.f32 %v365, %v443
    %v448 = vmul.f32 %v442, %v85
    %v449 = vperm.slane %v448, 0
    %v450 = vmul.f32 %v444, %v449
    %v451 = vmul.f32 %v445, %v449
    %v452 = vmul.f32 %v446, %v449
    %v453 = vmul.f32 %v447, %v449
    %v454 = vperm.slane %v85, 1
    %v455 = vadd.f32 %v450, %v454
    %v456 = vadd.f32 %v451, %v454
    %v457 = vadd.f32 %v452, %v454
    %v458 = vadd.f32 %v453, %v454
    %v459 = vmax.f32 %v455, 0.0
    %v460 = vmax.f32 %v456, 0.0
    %v461 = vmax.f32 %v457, 0.0
    %v462 = vmax.f32 %v458, 0.0
    %vm463 = vcmask 1040384
    %vm464 = vsmask.f32 256
    %vm465 = vmand %vm463, %vm464
    %v466 = vld [vmem:[#allocation2] sm:$0x1]
    %v467 = vsel %vm465, 0, %v466
    %468 = vst [vmem:[#allocation2] sm:$0x1] %v467
    %v469 = vld [vmem:[#allocation2 + $0xc] sm:$0x1]
    %v470 = vsel %vm465, 0, %v469
    %471 = vst [vmem:[#allocation2 + $0xc] sm:$0x1] %v470
    %vm472 = vsmask.f32 7938
    %vm473 = vmand %vm463, %vm472
    %v474 = vld [vmem:[#allocation2 + $0x8] sm:$0x1]
    %v475 = vsel %vm473, 0, %v474
    %476 = vst [vmem:[#allocation2 + $0x8] sm:$0x1] %v475
    %v477 = vld [vmem:[#allocation2 + $0x14] sm:$0x1]
    %v478 = vsel %vm473, 0, %v477
    %479 = vst [vmem:[#allocation2 + $0x14] sm:$0x1] %v478
    %v480 = vpack.c.bf16 %v459, %v459
    %v481 = vpack.c.bf16 %v460, %v460
    %v482 = vpack.c.bf16 %v461, %v461
    %v483 = vpack.c.bf16 %v462, %v462
    %vm484 = vsmask.f32 4368
    %vm485 = vmor %vm464, %vm484
    %v487 = vshrl.u32 %v480, 16
    %v489 = vrot.slane %v487, 7
    %v490 = vshll.u32 %v480, 16
    %v492 = vor.u32 %v489, %v490
    %v493 = vrot.slane %v489, 4
    %v495 = vshrl.u32 %v481, 16
    %v497 = vrot.slane %v495, 7
    %v498 = vshll.u32 %v481, 16
    %v500 = vor.u32 %v497, %v498
    %v501 = vsel %vm485, %v493, %v500
    %v502 = vrot.slane %v497, 4
    %v504 = vshrl.u32 %v482, 16
    %v506 = vrot.slane %v504, 7
    %v507 = vshll.u32 %v482, 16
    %v509 = vor.u32 %v506, %v507
    %v510 = vrot.slane %v506, 4
    %v512 = vshrl.u32 %v483, 16
    %v514 = vrot.slane %v512, 7
    %v515 = vshll.u32 %v483, 16
    %v517 = vor.u32 %v514, %v515
    %v518 = vsel %vm485, %v510, %v517
    %v519 = vrot.slane %v514, 4
    %vm526 = vcmask 1043456
    %vm527 = vmand %vm526, %vm472
    %v528 = vld [vmem:[#allocation2] sm:$0xf]
    %v529 = vsel %vm527, %v492, %v528
    %530 = vst [vmem:[#allocation2] sm:$0xf] %v529
    %531 = vst [vmem:[#allocation2 + $0x4] sm:$0xf] %v501
    %v532 = vld [vmem:[#allocation2 + $0x8] sm:$0x1]
    %v533 = vsel %vm465, %v502, %v532
    %534 = vst [vmem:[#allocation2 + $0x8] sm:$0x1] %v533
    %v535 = vld [vmem:[#allocation2 + $0xc] sm:$0xf]
    %v536 = vsel %vm527, %v509, %v535
    %537 = vst [vmem:[#allocation2 + $0xc] sm:$0xf] %v536
    %538 = vst [vmem:[#allocation2 + $0x10] sm:$0xf] %v518
    %v539 = vld [vmem:[#allocation2 + $0x14] sm:$0x1]
    %v540 = vsel %vm465, %v519, %v539
    %541 = vst [vmem:[#allocation2 + $0x14] sm:$0x1] %v540
    %v542 = vld [vmem:[#allocation2] sm:$0xf]
    %v543 = vld [vmem:[#allocation2 + $0x4] sm:$0xf]
    %v544 = vld [vmem:[#allocation2 + $0xc] sm:$0xf]
    %v545 = vld [vmem:[#allocation2 + $0x10] sm:$0xf]
    %v546 = vld [vmem:[#allocation6] sm:$0xf]
    %v547 = vld [vmem:[#allocation6 + $0x4] sm:$0xf]
    %v548 = vld [vmem:[#allocation6 + $0x8] sm:$0xf]
    %v549 = vld [vmem:[#allocation6 + $0xc] sm:$0xf]
    %v550 = vld [vmem:[#allocation6 + $0x10] sm:$0xf]
    %v551 = vld [vmem:[#allocation6 + $0x14] sm:$0xf]
    %v552 = vld [vmem:[#allocation6 + $0x18] sm:$0xf]
    %v553 = vld [vmem:[#allocation6 + $0x1c] sm:$0xf]
    %v554 = vld [vmem:[#allocation6 + $0x20] sm:$0xf]
    %v555 = vld [vmem:[#allocation6 + $0x24] sm:$0xf]
    %v556 = vld [vmem:[#allocation6 + $0x28] sm:$0xf]
    %v557 = vld [vmem:[#allocation6 + $0x2c] sm:$0xf]
    %v558 = vld [vmem:[#allocation6 + $0x30] sm:$0xf]
    %v559 = vld [vmem:[#allocation6 + $0x34] sm:$0xf]
    %v560 = vld [vmem:[#allocation6 + $0x38] sm:$0xf]
    %v561 = vld [vmem:[#allocation6 + $0x3c] sm:$0xf]
    %v562 = vld [vmem:[#allocation2 + $0x8] sm:$0x1]
    %v563 = vld [vmem:[#allocation2 + $0x14] sm:$0x1]
    %v565 = vshrl.u32 %v542, 16
    %v567 = vrot.slane %v565, 4
    %v568 = vshll.u32 %v542, 16
    %v570 = vrot.slane %v568, 5
    %v571 = vor.u32 %v567, %v570
    %v572 = vrot.slane %v571, 4
    %v574 = vshll.u32 %v543, 16
    %v576 = vrot.slane %v574, 5
    %v577 = vsel %vm102, %v572, %v576
    %v578 = vshrl.u32 %v543, 16
    %v580 = vrot.slane %v578, 4
    %v581 = vor.u32 %v580, %v576
    %v582 = vrot.slane %v581, 4
    %v584 = vshll.u32 %v562, 16
    %v586 = vrot.slane %v584, 5
    %v587 = vsel %vm102, %v582, %v586
    %v589 = vshrl.u32 %v544, 16
    %v591 = vrot.slane %v589, 4
    %v592 = vshll.u32 %v544, 16
    %v594 = vrot.slane %v592, 5
    %v595 = vor.u32 %v591, %v594
    %v596 = vrot.slane %v595, 4
    %v598 = vshll.u32 %v545, 16
    %v600 = vrot.slane %v598, 5
    %v601 = vsel %vm102, %v596, %v600
    %v602 = vshrl.u32 %v545, 16
    %v604 = vrot.slane %v602, 4
    %v605 = vor.u32 %v604, %v600
    %v606 = vrot.slane %v605, 4
    %v608 = vshll.u32 %v563, 16
    %v610 = vrot.slane %v608, 5
    %v611 = vsel %vm102, %v606, %v610
    %s612 = scalar_lea.vmem [#allocation6], 64
    %v613 = vld [vmem:[%s612] sm:$0xf]
    %v614 = vld [vmem:[%s612 + $0x4] sm:$0xf]
    %v615 = vld [vmem:[%s612 + $0x8] sm:$0xf]
    %v616 = vld [vmem:[%s612 + $0xc] sm:$0xf]
    %v617 = vld [vmem:[%s612 + $0x10] sm:$0xf]
    %v618 = vld [vmem:[%s612 + $0x14] sm:$0xf]
    %v619 = vld [vmem:[%s612 + $0x18] sm:$0xf]
    %v620 = vld [vmem:[%s612 + $0x1c] sm:$0xf]
    %v621 = vld [vmem:[%s612 + $0x20] sm:$0xf]
    %v622 = vld [vmem:[%s612 + $0x24] sm:$0xf]
    %v623 = vld [vmem:[%s612 + $0x28] sm:$0xf]
    %v624 = vld [vmem:[%s612 + $0x2c] sm:$0xf]
    %v625 = vld [vmem:[%s612 + $0x30] sm:$0xf]
    %v626 = vld [vmem:[%s612 + $0x34] sm:$0xf]
    %v627 = vld [vmem:[%s612 + $0x38] sm:$0xf]
    %v628 = vld [vmem:[%s612 + $0x3c] sm:$0xf]
    %v629 = vunpack.c.l.b16 %v577
    %v630 = vunpack.c.l.b16 %v587
    %v631 = vunpack.c.l.b16 %v601
    %v632 = vunpack.c.l.b16 %v611
    %v633 = vpack.c.b16 %v630, %v629
    %v634 = vpack.c.b16 %v632, %v631
    %v653 = vunpack.c.l.b16 %v613
    %v654 = vunpack.c.l.b16 %v614
    %v655 = vunpack.c.l.b16 %v615
    %v656 = vunpack.c.l.b16 %v616
    %v657 = vunpack.c.l.b16 %v617
    %v658 = vunpack.c.l.b16 %v618
    %v659 = vunpack.c.l.b16 %v619
    %v660 = vunpack.c.l.b16 %v620
    %v661 = vunpack.c.l.b16 %v621
    %v662 = vunpack.c.l.b16 %v622
    %v663 = vunpack.c.l.b16 %v623
    %v664 = vunpack.c.l.b16 %v624
    %v665 = vunpack.c.l.b16 %v625
    %v666 = vunpack.c.l.b16 %v626
    %v667 = vunpack.c.l.b16 %v627
    %v668 = vunpack.c.l.b16 %v628
    %v669 = vpack.c.b16 %v654, %v653
    %v670 = vpack.c.b16 %v656, %v655
    %v671 = vpack.c.b16 %v658, %v657
    %v672 = vpack.c.b16 %v660, %v659
    %v673 = vpack.c.b16 %v662, %v661
    %v674 = vpack.c.b16 %v664, %v663
    %v675 = vpack.c.b16 %v666, %v665
    %v676 = vpack.c.b16 %v668, %v667
    %685 = vmatpush.bf16.msra.mxu0 %v676
    %686 = vmatpush.bf16.msra.mxu0 %v675
    %687 = vmatpush.bf16.msra.mxu0 %v674
    %688 = vmatpush.bf16.msra.mxu0 %v673
    %689 = vmatpush.bf16.msra.mxu0 %v672
    %690 = vmatpush.bf16.msra.mxu0 %v671
    %691 = vmatpush.bf16.msra.mxu0 %v670
    %692 = vmatpush.bf16.msra.mxu0 %v669
    %693 = vmatmul.bf16.gmra.mxu0 %v633
    %v694 = vpop.f32.mrf.mxu0
    %v695 = vadd.f32 0.0, %v694
    %v696 = vpop.f32.mrf.mxu0
    %v697 = vadd.f32 0.0, %v696
    %698 = vmatmul.bf16.gmra.mxu0 %v634
    %v699 = vpop.f32.mrf.mxu0
    %v700 = vadd.f32 0.0, %v699
    %v701 = vpop.f32.mrf.mxu0
    %v702 = vadd.f32 0.0, %v701
    %703 = vdwg.mxu0
    %v708 = vunpack.c.l.b16 %v542
    %v709 = vunpack.c.l.b16 %v543
    %v710 = vunpack.c.l.b16 %v544
    %v711 = vunpack.c.l.b16 %v545
    %v712 = vpack.c.b16 %v709, %v708
    %v713 = vpack.c.b16 %v711, %v710
    %v732 = vunpack.c.l.b16 %v546
    %v733 = vunpack.c.l.b16 %v547
    %v734 = vunpack.c.l.b16 %v548
    %v735 = vunpack.c.l.b16 %v549
    %v736 = vunpack.c.l.b16 %v550
    %v737 = vunpack.c.l.b16 %v551
    %v738 = vunpack.c.l.b16 %v552
    %v739 = vunpack.c.l.b16 %v553
    %v740 = vunpack.c.l.b16 %v554
    %v741 = vunpack.c.l.b16 %v555
    %v742 = vunpack.c.l.b16 %v556
    %v743 = vunpack.c.l.b16 %v557
    %v744 = vunpack.c.l.b16 %v558
    %v745 = vunpack.c.l.b16 %v559
    %v746 = vunpack.c.l.b16 %v560
    %v747 = vunpack.c.l.b16 %v561
    %v748 = vpack.c.b16 %v733, %v732
    %v749 = vpack.c.b16 %v735, %v734
    %v750 = vpack.c.b16 %v737, %v736
    %v751 = vpack.c.b16 %v739, %v738
    %v752 = vpack.c.b16 %v741, %v740
    %v753 = vpack.c.b16 %v743, %v742
    %v754 = vpack.c.b16 %v745, %v744
    %v755 = vpack.c.b16 %v747, %v746
    %764 = vmatpush.bf16.msra.mxu0 %v755
    %765 = vmatpush.bf16.msra.mxu0 %v754
    %766 = vmatpush.bf16.msra.mxu0 %v753
    %767 = vmatpush.bf16.msra.mxu0 %v752
    %768 = vmatpush.bf16.msra.mxu0 %v751
    %769 = vmatpush.bf16.msra.mxu0 %v750
    %770 = vmatpush.bf16.msra.mxu0 %v749
    %771 = vmatpush.bf16.msra.mxu0 %v748
    %772 = vmatmul.bf16.gmra.mxu0 %v712
    %v773 = vpop.f32.mrf.mxu0
    %v774 = vadd.f32 %v695, %v773
    %v775 = vpop.f32.mrf.mxu0
    %v776 = vadd.f32 %v697, %v775
    %777 = vmatmul.bf16.gmra.mxu0 %v713
    %v778 = vpop.f32.mrf.mxu0
    %v779 = vadd.f32 %v700, %v778
    %v780 = vpop.f32.mrf.mxu0
    %v781 = vadd.f32 %v702, %v780
    %782 = vdwg.mxu0
    %v783 = vld [vmem:[#allocation2] sm:$0xe]
    %v784 = vld [vmem:[#allocation2 + $0xc] sm:$0xe]
    %v789 = vrot.slane %v783, 5
    %v790 = vrot.slane %v789, 4
    %v791 = vrot.slane %v543, 5
    %v792 = vsel %vm283, %v790, %v791
    %v793 = vrot.slane %v791, 4
    %v794 = vrot.slane %v562, 5
    %v795 = vsel %vm283, %v793, %v794
    %v796 = vrot.slane %v784, 5
    %v797 = vrot.slane %v796, 4
    %v798 = vrot.slane %v545, 5
    %v799 = vsel %vm283, %v797, %v798
    %v800 = vrot.slane %v798, 4
    %v801 = vrot.slane %v563, 5
    %v802 = vsel %vm283, %v800, %v801
    %s803 = scalar_lea.vmem [#allocation6], 128
    %v804 = vld [vmem:[%s803] sm:$0xf]
    %v805 = vld [vmem:[%s803 + $0x4] sm:$0xf]
    %v806 = vld [vmem:[%s803 + $0x8] sm:$0xf]
    %v807 = vld [vmem:[%s803 + $0xc] sm:$0xf]
    %v808 = vld [vmem:[%s803 + $0x10] sm:$0xf]
    %v809 = vld [vmem:[%s803 + $0x14] sm:$0xf]
    %v810 = vld [vmem:[%s803 + $0x18] sm:$0xf]
    %v811 = vld [vmem:[%s803 + $0x1c] sm:$0xf]
    %v812 = vld [vmem:[%s803 + $0x20] sm:$0xf]
    %v813 = vld [vmem:[%s803 + $0x24] sm:$0xf]
    %v814 = vld [vmem:[%s803 + $0x28] sm:$0xf]
    %v815 = vld [vmem:[%s803 + $0x2c] sm:$0xf]
    %v816 = vld [vmem:[%s803 + $0x30] sm:$0xf]
    %v817 = vld [vmem:[%s803 + $0x34] sm:$0xf]
    %v818 = vld [vmem:[%s803 + $0x38] sm:$0xf]
    %v819 = vld [vmem:[%s803 + $0x3c] sm:$0xf]
    %v820 = vunpack.c.l.b16 %v792
    %v821 = vunpack.c.l.b16 %v795
    %v822 = vunpack.c.l.b16 %v799
    %v823 = vunpack.c.l.b16 %v802
    %v824 = vpack.c.b16 %v821, %v820
    %v825 = vpack.c.b16 %v823, %v822
    %v844 = vunpack.c.l.b16 %v804
    %v845 = vunpack.c.l.b16 %v805
    %v846 = vunpack.c.l.b16 %v806
    %v847 = vunpack.c.l.b16 %v807
    %v848 = vunpack.c.l.b16 %v808
    %v849 = vunpack.c.l.b16 %v809
    %v850 = vunpack.c.l.b16 %v810
    %v851 = vunpack.c.l.b16 %v811
    %v852 = vunpack.c.l.b16 %v812
    %v853 = vunpack.c.l.b16 %v813
    %v854 = vunpack.c.l.b16 %v814
    %v855 = vunpack.c.l.b16 %v815
    %v856 = vunpack.c.l.b16 %v816
    %v857 = vunpack.c.l.b16 %v817
    %v858 = vunpack.c.l.b16 %v818
    %v859 = vunpack.c.l.b16 %v819
    %v860 = vpack.c.b16 %v845, %v844
    %v861 = vpack.c.b16 %v847, %v846
    %v862 = vpack.c.b16 %v849, %v848
    %v863 = vpack.c.b16 %v851, %v850
    %v864 = vpack.c.b16 %v853, %v852
    %v865 = vpack.c.b16 %v855, %v854
    %v866 = vpack.c.b16 %v857, %v856
    %v867 = vpack.c.b16 %v859, %v858
    %876 = vmatpush.bf16.msra.mxu0 %v867
    %877 = vmatpush.bf16.msra.mxu0 %v866
    %878 = vmatpush.bf16.msra.mxu0 %v865
    %879 = vmatpush.bf16.msra.mxu0 %v864
    %880 = vmatpush.bf16.msra.mxu0 %v863
    %881 = vmatpush.bf16.msra.mxu0 %v862
    %882 = vmatpush.bf16.msra.mxu0 %v861
    %883 = vmatpush.bf16.msra.mxu0 %v860
    %884 = vmatmul.bf16.gmra.mxu0 %v824
    %v885 = vpop.f32.mrf.mxu0
    %v886 = vadd.f32 0.0, %v885
    %v887 = vpop.f32.mrf.mxu0
    %v888 = vadd.f32 0.0, %v887
    %889 = vmatmul.bf16.gmra.mxu0 %v825
    %v890 = vpop.f32.mrf.mxu0
    %v891 = vadd.f32 0.0, %v890
    %v892 = vpop.f32.mrf.mxu0
    %v893 = vadd.f32 0.0, %v892
    %894 = vdwg.mxu0
    %v895 = vadd.f32 %v774, %v886
    %v896 = vadd.f32 %v776, %v888
    %v897 = vadd.f32 %v779, %v891
    %v898 = vadd.f32 %v781, %v893
    %v899 = vadd.f32 %v895, %v896
    %v900 = vadd.f32 %v899, %v897
    %v901 = vadd.f32 %v900, %v898
    %v902 = vrot.slane %v901, 4
    %v903 = vadd.f32 %v901, %v902
    %v904 = vrot.slane %v903, 2
    %v905 = vadd.f32 %v903, %v904
    %v906 = vrot.slane %v905, 1
    %v907 = vadd.f32 %v905, %v906
    %v908 = vmul.f32 %v895, %v895
    %v909 = vmul.f32 %v896, %v896
    %v910 = vmul.f32 %v897, %v897
    %v911 = vmul.f32 %v898, %v898
    %v912 = vadd.f32 %v908, %v909
    %v913 = vadd.f32 %v912, %v910
    %v914 = vadd.f32 %v913, %v911
    %v915 = vrot.slane %v914, 4
    %v916 = vadd.f32 %v914, %v915
    %v917 = vrot.slane %v916, 2
    %v918 = vadd.f32 %v916, %v917
    %v919 = vrot.slane %v918, 1
    %v920 = vadd.f32 %v918, %v919
    %921 = vmatpush.msra.mxu0 %v84
    %922 = vmatpush.msra.mxu0 %v83
    %923 = vmatpush.msra.mxu0 %v82
    %924 = vmatpush.msra.mxu0 %v81
    %925 = vmatpush.msra.mxu0 %v80
    %926 = vmatpush.msra.mxu0 %v79
    %927 = vmatpush.msra.mxu0 %v78
    %928 = vmatpush.msra.mxu0 %v77
    %929 = vmatpush.msra.mxu0 %v76
    %930 = vmatpush.msra.mxu0 %v75
    %931 = vmatpush.msra.mxu0 %v74
    %932 = vmatpush.msra.mxu0 %v73
    %933 = vmatpush.msra.mxu0 %v72
    %934 = vmatpush.msra.mxu0 %v71
    %935 = vmatpush.msra.mxu0 %v70
    %936 = vmatpush.msra.mxu0 %v69
    %937 = vmatmul.f32.gmra.mxu0 %v907
    %v938 = vpop.f32.mrf.mxu0
    %v939 = vadd.f32 0.0, %v938
    %940 = vdwg.mxu0
    %v941 = vmul.f32 %v939, 0.001953125
    %942 = vmatpush.msra.mxu0 %v84
    %943 = vmatpush.msra.mxu0 %v83
    %944 = vmatpush.msra.mxu0 %v82
    %945 = vmatpush.msra.mxu0 %v81
    %946 = vmatpush.msra.mxu0 %v80
    %947 = vmatpush.msra.mxu0 %v79
    %948 = vmatpush.msra.mxu0 %v78
    %949 = vmatpush.msra.mxu0 %v77
    %950 = vmatpush.msra.mxu0 %v76
    %951 = vmatpush.msra.mxu0 %v75
    %952 = vmatpush.msra.mxu0 %v74
    %953 = vmatpush.msra.mxu0 %v73
    %954 = vmatpush.msra.mxu0 %v72
    %955 = vmatpush.msra.mxu0 %v71
    %956 = vmatpush.msra.mxu0 %v70
    %957 = vmatpush.msra.mxu0 %v69
    %958 = vmatmul.f32.gmra.mxu0 %v920
    %v959 = vpop.f32.mrf.mxu0
    %v960 = vadd.f32 0.0, %v959
    %961 = vdwg.mxu0
    %v962 = vmul.f32 %v960, 0.001953125
    %v963 = vmul.f32 %v941, %v941
    %v964 = vsub.f32 %v962, %v963
    %v965 = vadd.f32 %v964, 1e-05
    %v966 = vrsqrt.pop %v965
    %v967 = vmul.f32 %v966, %v965
    %v968 = vmul.f32 %v967, %v966
    %v969 = vmul.f32 0.5, %v968
    %v970 = vsub.f32 1.5, %v969
    %v971 = vmul.f32 %v966, %v970
    %vm972 = vweird.f32 %v965
    %vm973 = vweird.f32 %v966
    %vm974 = vmor %vm972, %vm973
    %v975 = vsel %vm974, %v966, %v971
    %v976 = vperm.slane %v941, 0
    %v977 = vsub.f32 %v895, %v976
    %v978 = vsub.f32 %v896, %v976
    %v979 = vsub.f32 %v897, %v976
    %v980 = vsub.f32 %v898, %v976
    %v982 = vrot.slane %v85, 2
    %v984 = vmul.f32 %v975, %v982
    %v985 = vperm.slane %v984, 0
    %v986 = vmul.f32 %v977, %v985
    %v987 = vmul.f32 %v978, %v985
    %v988 = vmul.f32 %v979, %v985
    %v989 = vmul.f32 %v980, %v985
    %v990 = vperm.slane %v85, 3
    %v991 = vadd.f32 %v986, %v990
    %v992 = vadd.f32 %v987, %v990
    %v993 = vadd.f32 %v988, %v990
    %v994 = vadd.f32 %v989, %v990
    %v995 = vmax.f32 %v991, 0.0
    %v996 = vmax.f32 %v992, 0.0
    %v997 = vmax.f32 %v993, 0.0
    %v998 = vmax.f32 %v994, 0.0
    %999 = vst [vmem:[#allocation9] sm:$0xff] %v995
    %1000 = vst [vmem:[#allocation9 + $0x8] sm:$0xff] %v996
    %1001 = vst [vmem:[#allocation9 + $0x10] sm:$0xff] %v997
    %1002 = vst [vmem:[#allocation9 + $0x18] sm:$0xff] %v998
    // Predicated region
    $region34: #{tpu_custom_call.1} parent=1 // pred_check
      _
    $region35: #{tpu_custom_call.1} parent=1 // pred_check_branch
      %1004 = sbr.rel (0) target = $region37
    $region36: #{tpu_custom_call.1} parent=1 // pred_region
      %1006 = vsyncadd [#allocation5], 0
      %s1007 = sshll.u32 [#allocation9], 4
      %s1008 = int_to_ptr.vmem [resolvable:$true] %s1007
      %s1009 = sshll.u32 %s5, 4
      %s1010 = int_to_ptr.hbm [resolvable:$true] %s1009
      %1015 = dma.vmem_to_hbm [thread:$0]  %s1008, 512, %s1010, [#allocation5], 128, 128, 8
    $region37: #{tpu_custom_call.1} parent=1 // pred_fallthru
      _
    // Predicated region
    $region38: #{tpu_custom_call.1} parent=1 // pred_check
      _
    $region39: #{tpu_custom_call.1} parent=1 // pred_check_branch
      %1017 = sbr.rel (0) target = $region41
    $region40: #{tpu_custom_call.1} parent=1 // pred_region
      %1019 = dma.done [#allocation5], 512
    $region41: #{tpu_custom_call.1} parent=1 // pred_fallthru
      _
    %1020 = vsyncpa [#allocation4], 1
    %1021 = vsyncpa [#allocation7], 1
    %1022 = vsyncpa [#allocation5], 1

</llo_original>
